<compile_context>
chip_gen: v5e
topology: v5e:2x2
jax: 0.10.0
libtpu: 0.0.40
codegen_flags: <defaults>
</compile_context>

<pallas_src>
import jax
import jax.numpy as jnp
from jax.experimental import pallas as pl
from jax.experimental.pallas import tpu as pltpu


def gah_kernel(x_ref, lens_ref, wvt_ref, bv_ref, wq_ref, out_ref):
    # x_ref:    (T, TB, Din)   embeddings, native (time, batch, feature) layout
    # lens_ref: (1, TB, 1)     int32 sequence lengths
    # wvt_ref:  (Din, O)       Wv^T (pre-transposed in wrapper)
    # bv_ref:   (1, O)         value bias (added once, post-normalization)
    # wq_ref:   (Din, 1)       Wk^T @ q (query folded into key projection)
    # out_ref:  (TB, O)
    T, TB, Din = x_ref.shape

    x = x_ref[...]                                                        # (T, TB, Din)

    # Attention energies: one skinny MXU matmul over the whole (T*TB) slab.
    # TB is a multiple of 8 so the reshape is a layout no-op.
    e = jnp.dot(x.reshape(T * TB, Din), wq_ref[...],
                preferred_element_type=jnp.float32).reshape(T, TB, 1)     # (T, TB, 1)

    # Mask padded timesteps and stabilize the softmax (shift-invariant, so it
    # matches the un-stabilized PyTorch reference exactly in real arithmetic).
    t_idx = jax.lax.broadcasted_iota(jnp.int32, (T, TB, 1), 0)
    valid = t_idx < lens_ref[...]
    e_masked = jnp.where(valid, e, jnp.float32(-1e30))
    m = jnp.max(e_masked, axis=0, keepdims=True)                          # (1, TB, 1)
    w = jnp.where(valid, jnp.exp(e - m), 0.0)                             # (T, TB, 1)
    denom = jnp.sum(w, axis=0)                                            # (TB, 1)

    # Pool-then-project: pool raw embeddings with the (un-normalized) softmax
    # numerator, then a single (TB, Din) @ (Din, O) value projection.
    s = jnp.sum(x * w, axis=0)                                            # (TB, Din)
    num = jnp.dot(s, wvt_ref[...], preferred_element_type=jnp.float32)    # (TB, O)

    # Exact reciprocal keeps the 1e-5-level tolerance; bv added once at the
    # end (weights sum to 1 after normalization).
    out_ref[...] = (num * pl.reciprocal(denom, approx=False)
                    + bv_ref[...]).astype(out_ref.dtype)


def _round_up(n, m):
    return (n + m - 1) // m * m


def global_attention_head(embs_tbd, lengths, wk, bk, wv, bv, q, *, block_b=None):
    """embs_tbd: (T, B, inp_dim), lengths: (B,) int. Returns (B, out_dim) f32.

    bk is accepted for interface parity with the PyTorch module but is not
    needed by the kernel: bk @ q adds the same constant to every attention
    energy and cancels exactly in the softmax normalization.
    """
    T, B, Din = embs_tbd.shape
    O = wv.shape[0]
    del bk  # constant shift of energies -> softmax-invariant

    # Fold the global query into the key projection.
    wq = jnp.dot(jnp.asarray(wk, jnp.float32).T, jnp.asarray(q, jnp.float32),
                 precision=jax.lax.Precision.HIGHEST).reshape(Din, 1)
    wvt = jnp.asarray(wv, jnp.float32).T                                   # (Din, O)
    bv2 = jnp.asarray(bv, jnp.float32).reshape(1, O)

    # --- Batch-tile selection (VMEM-budgeted, v7x-safe) -------------------
    # The double-buffered x tile dominates VMEM.  In VMEM the last dim is
    # lane-padded to a multiple of 128 (Din=32 -> 128: 4x inflation), so the
    # real footprint is 2 * T * TB * round_up(Din,128) * 4 bytes.  Budget a
    # few MiB per buffer: big enough to amortize per-grid-step overhead and
    # keep strided DMA chunks large, small enough to fit v7x's 64 MiB VMEM
    # (32 MiB default scoped) with headroom.
    din_pad = _round_up(Din, 128)
    if block_b is None:
        x_budget = 16 << 20                       # bytes for the double-buffered x tile
        tb = x_budget // (2 * T * din_pad * 4)
        tb = max(8, min((tb // 8) * 8, _round_up(B, 8)))
        # Prefer >= 2 grid steps when the batch allows, so the "parallel"
        # batch axis actually feeds both TensorCores on v7x.
        if _round_up(B, tb) // tb < 2 and B >= 16:
            tb = max(8, ((_round_up(B, 8) // 2) // 8) * 8)
        block_b = tb
    TB = max(8, _round_up(block_b, 8))
    B_pad = _round_up(B, TB)

    # TODO(synk): optionally cast x / weights to bfloat16 (kernel is HBM-bound;
    # ~2x bytes saved) once the caller accepts the precision change.
    x = jnp.asarray(embs_tbd, jnp.float32)
    lens = jnp.asarray(lengths, jnp.int32)
    if B_pad != B:
        # Invariant: pad rows are zero-filled x with length 1 -> denom == 1,
        # no inf/NaN; they are sliced off below.
        x = jnp.pad(x, ((0, 0), (0, B_pad - B), (0, 0)))
        lens = jnp.pad(lens, (0, B_pad - B), constant_values=1)
    lens3 = lens.reshape(1, B_pad, 1)

    # Explicit scoped-VMEM limit so the large tile compiles on every
    # generation (default scoped limit is 16 MiB on v5e / 32 MiB on v6e+).
    o_pad = _round_up(O, 128)
    x_tile_bytes = 2 * T * TB * din_pad * 4
    vmem_limit = min(48 << 20,
                     x_tile_bytes + 2 * TB * o_pad * 4 + (8 << 20))

    out = pl.pallas_call(
        gah_kernel,
        out_shape=jax.ShapeDtypeStruct((B_pad, O), jnp.float32),
        grid=(B_pad // TB,),
        in_specs=[
            pl.BlockSpec((T, TB, Din), lambda i: (0, i, 0)),   # embs, native (T,B,D)
            pl.BlockSpec((1, TB, 1), lambda i: (0, i, 0)),     # lengths
            pl.BlockSpec((Din, O), lambda i: (0, 0)),          # Wv^T
            pl.BlockSpec((1, O), lambda i: (0, 0)),            # bv
            pl.BlockSpec((Din, 1), lambda i: (0, 0)),          # Wk^T @ q
        ],
        out_specs=pl.BlockSpec((TB, O), lambda i: (i, 0)),
        compiler_params=pltpu.CompilerParams(
            dimension_semantics=("parallel",),
            vmem_limit_bytes=int(vmem_limit)),
    )(x, lens3, wvt, bv2, wq)

    return out[:B]


def ref_forward(embs, lengths, wk, bk, wv, bv, q):
    """Pure-JAX reference mirroring the PyTorch per-example loop."""
    B = int(lengths.shape[0])
    outs = []
    for b in range(B):
        L = int(lengths[b])
        seq = embs[:L, b, :]
        keys = seq @ wk.T + bk
        vals = seq @ wv.T + bv
        e = keys @ q
        w = jnp.exp(e)
        w = w / w.sum()
        outs.append((vals * w[:, None]).sum(0))
    return jnp.stack(outs, axis=0)


if __name__ == "__main__":
    # Module config: inp_dim=32, out_dim=16 -> query_dim = max(32, 16) = 32
    T, B, INP, OUT = 8, 2, 32, 16
    Q = max(INP, OUT)

    key = jax.random.PRNGKey(0)
    k_embs, k_wk, k_bk, k_wv, k_bv = jax.random.split(key, 5)

    embs = jax.random.normal(k_embs, (T, B, INP), dtype=jnp.float32)
    lengths = jnp.array([8, 5], dtype=jnp.int32)

    # Deterministic parameter init (shapes from __init__):
    #   global_query_weights: ones(query_dim)   (matches torch.ones init)
    #   key_weights:   Linear(inp_dim, query_dim) -> W (Q, INP), b (Q,)
    #   value_weights: Linear(inp_dim, out_dim)   -> W (O, INP), b (O,)
    q_global = jnp.ones((Q,), dtype=jnp.float32)
    wk = 0.1 * jax.random.normal(k_wk, (Q, INP), dtype=jnp.float32)
    bk = 0.1 * jax.random.normal(k_bk, (Q,), dtype=jnp.float32)
    wv = 0.1 * jax.random.normal(k_wv, (OUT, INP), dtype=jnp.float32)
    bv = 0.1 * jax.random.normal(k_bv, (OUT,), dtype=jnp.float32)

    out = global_attention_head(embs, lengths, wk, bk, wv, bv, q_global)
    out = jax.block_until_ready(out)

    ref = ref_forward(embs, lengths, wk, bk, wv, bv, q_global)
    assert out.shape == (B, OUT)
    assert jnp.allclose(out, ref, atol=2e-5, rtol=2e-5), (out, ref)

    print("KERNEL_OK")
</pallas_src>

<mosaic_0001>
module attributes {stable_mosaic.version = 11 : i64} {
  func.func @gah_kernel(%arg0: i32, %arg1: memref<8x8x32xf32, #tpu.memory_space<vmem>>, %arg2: memref<1x8x1xi32, #tpu.memory_space<vmem>>, %arg3: memref<32x16xf32, #tpu.memory_space<vmem>>, %arg4: memref<1x16xf32, #tpu.memory_space<vmem>>, %arg5: memref<32x1xf32, #tpu.memory_space<vmem>>, %arg6: memref<8x16xf32, #tpu.memory_space<vmem>>) attributes {dimension_semantics = [#tpu.dimension_semantics<parallel>], iteration_bounds = array<i64: 1>, scalar_prefetch = 0 : i64, scratch_operands = 0 : i64, tpu.core_type = #tpu.core_type<tc>, window_params = [{transform_indices = @transform_0, window_bounds = array<i64: 8, 8, 32>}, {transform_indices = @transform_1, window_bounds = array<i64: 1, 8, 1>}, {pipeline_mode = #tpu.pipeline_mode<synchronous>, transform_indices = @transform_2, window_bounds = array<i64: 32, 16>}, {pipeline_mode = #tpu.pipeline_mode<synchronous>, transform_indices = @transform_3, window_bounds = array<i64: 1, 16>}, {pipeline_mode = #tpu.pipeline_mode<synchronous>, transform_indices = @transform_4, window_bounds = array<i64: 32, 1>}, {transform_indices = @transform_5, window_bounds = array<i64: 8, 16>}]} {
    %c0 = arith.constant 0 : index
    %c0_0 = arith.constant 0 : index
    %c0_1 = arith.constant 0 : index
    %0 = vector.load %arg1[%c0, %c0_0, %c0_1] : memref<8x8x32xf32, #tpu.memory_space<vmem>>, vector<8x8x32xf32>
    %1 = vector.shape_cast %0 : vector<8x8x32xf32> to vector<64x32xf32>
    %c0_2 = arith.constant 0 : index
    %c0_3 = arith.constant 0 : index
    %2 = vector.load %arg5[%c0_2, %c0_3] : memref<32x1xf32, #tpu.memory_space<vmem>>, vector<32x1xf32>
    %cst = arith.constant dense<0.000000e+00> : vector<64x1xf32>
    %3 = tpu.matmul %1, %2, %cst {dimension_numbers = #tpu.dot_dimension_numbers<[1], [0], [0], [1], [0, 0, 1, 1], [], []>} : vector<64x32xf32>, vector<32x1xf32>, vector<64x1xf32> -> vector<64x1xf32>
    %4 = vector.shape_cast %3 : vector<64x1xf32> to vector<8x8x1xf32>
    %5 = tpu.iota {dimensions = array<i32: 0>} : vector<8x8x1xi32>
    %c0_4 = arith.constant 0 : index
    %c0_5 = arith.constant 0 : index
    %c0_6 = arith.constant 0 : index
    %6 = vector.load %arg2[%c0_4, %c0_5, %c0_6] : memref<1x8x1xi32, #tpu.memory_space<vmem>>, vector<1x8x1xi32>
    %7 = vector.broadcast %6 : vector<1x8x1xi32> to vector<8x8x1xi32>
    %8 = arith.cmpi slt, %5, %7 : vector<8x8x1xi32>
    %cst_7 = arith.constant -1.000000e+30 : f32
    %9 = vector.broadcast %cst_7 : f32 to vector<8x8x1xf32>
    %10 = arith.select %8, %4, %9 : vector<8x8x1xi1>, vector<8x8x1xf32>
    %cst_8 = arith.constant dense<0xFF800000> : vector<8x1xf32>
    %11 = vector.multi_reduction <maximumf>, %10, %cst_8 [0] : vector<8x8x1xf32> to vector<8x1xf32>
    %12 = vector.shape_cast %11 : vector<8x1xf32> to vector<1x8x1xf32>
    %13 = vector.broadcast %12 : vector<1x8x1xf32> to vector<8x8x1xf32>
    %14 = arith.subf %4, %13 : vector<8x8x1xf32>
    %15 = math.exp %14 : vector<8x8x1xf32>
    %cst_9 = arith.constant 0.000000e+00 : f32
    %16 = vector.broadcast %cst_9 : f32 to vector<8x8x1xf32>
    %17 = arith.select %8, %15, %16 : vector<8x8x1xi1>, vector<8x8x1xf32>
    %cst_10 = arith.constant dense<0.000000e+00> : vector<8x1xf32>
    %18 = vector.multi_reduction <add>, %17, %cst_10 [0] : vector<8x8x1xf32> to vector<8x1xf32>
    %19 = vector.broadcast %17 : vector<8x8x1xf32> to vector<8x8x32xf32>
    %20 = arith.mulf %0, %19 : vector<8x8x32xf32>
    %cst_11 = arith.constant dense<0.000000e+00> : vector<8x32xf32>
    %21 = vector.multi_reduction <add>, %20, %cst_11 [0] : vector<8x8x32xf32> to vector<8x32xf32>
    %c0_12 = arith.constant 0 : index
    %c0_13 = arith.constant 0 : index
    %22 = vector.load %arg3[%c0_12, %c0_13] : memref<32x16xf32, #tpu.memory_space<vmem>>, vector<32x16xf32>
    %cst_14 = arith.constant dense<0.000000e+00> : vector<8x16xf32>
    %23 = tpu.matmul %21, %22, %cst_14 {dimension_numbers = #tpu.dot_dimension_numbers<[1], [0], [0], [1], [0, 0, 1, 1], [], []>} : vector<8x32xf32>, vector<32x16xf32>, vector<8x16xf32> -> vector<8x16xf32>
    %24 = tpu.reciprocal %18 : vector<8x1xf32> -> vector<8x1xf32>
    %25 = vector.broadcast %24 : vector<8x1xf32> to vector<8x16xf32>
    %26 = arith.mulf %23, %25 : vector<8x16xf32>
    %c0_15 = arith.constant 0 : index
    %c0_16 = arith.constant 0 : index
    %27 = vector.load %arg4[%c0_15, %c0_16] : memref<1x16xf32, #tpu.memory_space<vmem>>, vector<1x16xf32>
    %28 = vector.broadcast %27 : vector<1x16xf32> to vector<8x16xf32>
    %29 = arith.addf %26, %28 : vector<8x16xf32>
    %c0_17 = arith.constant 0 : index
    %c0_18 = arith.constant 0 : index
    %30 = vector.load %arg6[%c0_17, %c0_18] : memref<8x16xf32, #tpu.memory_space<vmem>>, vector<8x16xf32>
    tpu.vector_store %arg6[%c0_17, %c0_18], %29 {strides = array<i32>} : memref<8x16xf32, #tpu.memory_space<vmem>>, vector<8x16xf32>,
    return
  }
  func.func @transform_0(%arg0: i32) -> (i32, i32, i32) {
    %c0_i32 = arith.constant 0 : i32
    %c0_i32_0 = arith.constant 0 : i32
    %c0_i32_1 = arith.constant 0 : i32
    return %c0_i32, %arg0, %c0_i32_0 : i32, i32, i32
  }
  func.func @transform_1(%arg0: i32) -> (i32, i32, i32) {
    %c0_i32 = arith.constant 0 : i32
    %c0_i32_0 = arith.constant 0 : i32
    %c0_i32_1 = arith.constant 0 : i32
    return %c0_i32, %arg0, %c0_i32_0 : i32, i32, i32
  }
  func.func @transform_2(%arg0: i32) -> (i32, i32) {
    %c0_i32 = arith.constant 0 : i32
    %c0_i32_0 = arith.constant 0 : i32
    %c0_i32_1 = arith.constant 0 : i32
    return %c0_i32, %c0_i32_0 : i32, i32
  }
  func.func @transform_3(%arg0: i32) -> (i32, i32) {
    %c0_i32 = arith.constant 0 : i32
    %c0_i32_0 = arith.constant 0 : i32
    %c0_i32_1 = arith.constant 0 : i32
    return %c0_i32, %c0_i32_0 : i32, i32
  }
  func.func @transform_4(%arg0: i32) -> (i32, i32) {
    %c0_i32 = arith.constant 0 : i32
    %c0_i32_0 = arith.constant 0 : i32
    %c0_i32_1 = arith.constant 0 : i32
    return %c0_i32, %c0_i32_0 : i32, i32
  }
  func.func @transform_5(%arg0: i32) -> (i32, i32) {
    %c0_i32 = arith.constant 0 : i32
    %c0_i32_0 = arith.constant 0 : i32
    return %arg0, %c0_i32 : i32, i32
  }
}

</mosaic_0001>

<llo_original>
// kernel: tpu_custom_call.1
$region0: #{tpu_custom_call.1}
  #allocation0 [shape = 'u32[]', space=smem, size = 0x4, offset = 0x4, fixed_abs, tag = 'smem constant byte address 0x4 - core index']
  #allocation1 [shape = 'u32[72,128]{1,0:T(1,128)}', space=vmem, size = 0x9000, scoped, tag = 'internal scratch']
  %s0 = inlined_call_operand.vmem [shape: f32[8,8,32], index: 0, kind: input, shape index: {}]
  %s1 = inlined_call_operand.vmem [shape: s32[1,8,1], index: 1, kind: input, shape index: {}]
  %s2 = inlined_call_operand.vmem [shape: f32[32,16], index: 2, kind: input, shape index: {}]
  %s3 = inlined_call_operand.vmem [shape: f32[1,16], index: 3, kind: input, shape index: {}]
  %s4 = inlined_call_operand.vmem [shape: f32[32,1], index: 4, kind: input, shape index: {}]
  %s5 = inlined_call_operand.hbm [shape: f32[8,16], index: 5, kind: output, shape index: {}]
  %s6 = sld [smem:[#allocation0]]
  $region30: #{tpu_custom_call.1} parent=0
    _
  %s8 = ssub.s32 1, %s6
  %s9 = scalar_select 0, %s8, %s6
  $region1: #{tpu_custom_call.1} parent=0
    #allocation2 [shape = 'u8[4096]{0}', space=vmem, size = 0x1000, scoped, tag = 'output window, operand 0, single buffered']
    #allocation3 [shape = 's32[1]{0}', space=sflag, size = 0x4, scoped, tag = 'scoped memory for tpu_custom_call.1']
    %10 = vsyncpa [#allocation3], 0
    // Predicated region
    $region2: #{tpu_custom_call.1} parent=1 // pred_check
      _
    $region3: #{tpu_custom_call.1} parent=1 // pred_check_branch
      %12 = sbr.rel (0) target = $region5
    $region4: #{tpu_custom_call.1} parent=1 // pred_region
      _
    $region5: #{tpu_custom_call.1} parent=1 // pred_fallthru
      _
    // Predicated region
    $region6: #{tpu_custom_call.1} parent=1 // pred_check
      _
    $region7: #{tpu_custom_call.1} parent=1 // pred_check_branch
      %14 = sbr.rel (0) target = $region9
    $region8: #{tpu_custom_call.1} parent=1 // pred_region
      _
    $region9: #{tpu_custom_call.1} parent=1 // pred_fallthru
      _
    // Predicated region
    $region10: #{tpu_custom_call.1} parent=1 // pred_check
      _
    $region11: #{tpu_custom_call.1} parent=1 // pred_check_branch
      %16 = sbr.rel (0) target = $region13
    $region12: #{tpu_custom_call.1} parent=1 // pred_region
      _
    $region13: #{tpu_custom_call.1} parent=1 // pred_fallthru
      _
    // Predicated region
    $region14: #{tpu_custom_call.1} parent=1 // pred_check
      _
    $region15: #{tpu_custom_call.1} parent=1 // pred_check_branch
      %18 = sbr.rel (0) target = $region17
    $region16: #{tpu_custom_call.1} parent=1 // pred_region
      _
    $region17: #{tpu_custom_call.1} parent=1 // pred_fallthru
      _
    // Predicated region
    $region18: #{tpu_custom_call.1} parent=1 // pred_check
      _
    $region19: #{tpu_custom_call.1} parent=1 // pred_check_branch
      %20 = sbr.rel (0) target = $region21
    $region20: #{tpu_custom_call.1} parent=1 // pred_region
      _
    $region21: #{tpu_custom_call.1} parent=1 // pred_fallthru
      _
    %v21 = vld [vmem:[%s0] sm:$0xff]
    %v22 = vld [vmem:[%s0 + $0x8] sm:$0xff]
    %v23 = vld [vmem:[%s0 + $0x10] sm:$0xff]
    %v24 = vld [vmem:[%s0 + $0x18] sm:$0xff]
    %v25 = vld [vmem:[%s0 + $0x20] sm:$0xff]
    %v26 = vld [vmem:[%s0 + $0x28] sm:$0xff]
    %v27 = vld [vmem:[%s0 + $0x30] sm:$0xff]
    %v28 = vld [vmem:[%s0 + $0x38] sm:$0xff]
    %v29 = vld [vmem:[%s4] sm:$0xff]
    %v30 = vld [vmem:[%s4 + $0x8] sm:$0xff]
    %v31 = vld [vmem:[%s4 + $0x10] sm:$0xff]
    %v32 = vld [vmem:[%s4 + $0x18] sm:$0xff]
    %vm33 = vcmask 261120
    %v35 = vsel %vm33, %v21, 0
    %v38 = vsel %vm33, %v22, 0
    %v41 = vsel %vm33, %v23, 0
    %v44 = vsel %vm33, %v24, 0
    %v47 = vsel %vm33, %v25, 0
    %v50 = vsel %vm33, %v26, 0
    %v53 = vsel %vm33, %v27, 0
    %v56 = vsel %vm33, %v28, 0
    %58 = vmatpush.msra.mxu0 0.0
    %59 = vmatpush.msra.mxu0 0.0
    %60 = vmatpush.msra.mxu0 0.0
    %61 = vmatpush.msra.mxu0 0.0
    %62 = vmatpush.msra.mxu0 0.0
    %63 = vmatpush.msra.mxu0 0.0
    %64 = vmatpush.msra.mxu0 0.0
    %65 = vmatpush.msra.mxu0 0.0
    %66 = vmatpush.msra.mxu0 0.0
    %67 = vmatpush.msra.mxu0 0.0
    %68 = vmatpush.msra.mxu0 0.0
    %69 = vmatpush.msra.mxu0 0.0
    %70 = vmatpush.msra.mxu0 %v32
    %71 = vmatpush.msra.mxu0 %v31
    %72 = vmatpush.msra.mxu0 %v30
    %73 = vmatpush.msra.mxu0 %v29
    %74 = vmatmul.f32.gmra.mxu0 %v35
    %v75 = vpop.f32.mrf.mxu0
    %v76 = vadd.f32 0.0, %v75
    %77 = vmatmul.f32.gmra.mxu0 %v38
    %v78 = vpop.f32.mrf.mxu0
    %v79 = vadd.f32 0.0, %v78
    %80 = vmatmul.f32.gmra.mxu0 %v41
    %v81 = vpop.f32.mrf.mxu0
    %v82 = vadd.f32 0.0, %v81
    %83 = vmatmul.f32.gmra.mxu0 %v44
    %v84 = vpop.f32.mrf.mxu0
    %v85 = vadd.f32 0.0, %v84
    %86 = vmatmul.f32.gmra.mxu0 %v47
    %v87 = vpop.f32.mrf.mxu0
    %v88 = vadd.f32 0.0, %v87
    %89 = vmatmul.f32.gmra.mxu0 %v50
    %v90 = vpop.f32.mrf.mxu0
    %v91 = vadd.f32 0.0, %v90
    %92 = vmatmul.f32.gmra.mxu0 %v53
    %v93 = vpop.f32.mrf.mxu0
    %v94 = vadd.f32 0.0, %v93
    %95 = vmatmul.f32.gmra.mxu0 %v56
    %v96 = vpop.f32.mrf.mxu0
    %v97 = vadd.f32 0.0, %v96
    %98 = vdwg.mxu0
    %v99 = vld [vmem:[%s1] sm:$0xff]
    %vm100 = vcmp.gt.s32.totalorder %v99, 0
    %vm101 = vcmp.gt.s32.totalorder %v99, 1
    %vm102 = vcmp.gt.s32.totalorder %v99, 2
    %vm103 = vcmp.gt.s32.totalorder %v99, 3
    %vm104 = vcmp.gt.s32.totalorder %v99, 4
    %vm105 = vcmp.gt.s32.totalorder %v99, 5
    %vm106 = vcmp.gt.s32.totalorder %v99, 6
    %vm107 = vcmp.gt.s32.totalorder %v99, 7
    %v108 = vsel %vm100, %v76, -1e+30
    %v109 = vsel %vm101, %v79, -1e+30
    %v110 = vsel %vm102, %v82, -1e+30
    %v111 = vsel %vm103, %v85, -1e+30
    %v112 = vsel %vm104, %v88, -1e+30
    %v113 = vsel %vm105, %v91, -1e+30
    %v114 = vsel %vm106, %v94, -1e+30
    %v115 = vsel %vm107, %v97, -1e+30
    %vm116 = vcmask 7168
    %v117 = vsel %vm116, %v108, -inf
    %v118 = vsel %vm116, %v109, -inf
    %v119 = vsel %vm116, %v110, -inf
    %v120 = vsel %vm116, %v111, -inf
    %v121 = vsel %vm116, %v112, -inf
    %v122 = vmax.f32 %v117, %v121
    %v123 = vsel %vm116, %v113, -inf
    %v124 = vmax.f32 %v118, %v123
    %v125 = vsel %vm116, %v114, -inf
    %v126 = vmax.f32 %v119, %v125
    %v127 = vsel %vm116, %v115, -inf
    %v128 = vmax.f32 %v120, %v127
    %v129 = vmax.f32 %v122, %v124
    %v130 = vmax.f32 %v126, %v128
    %v131 = vmax.f32 %v129, %v130
    %v132 = vsub.f32 %v76, %v131
    %v133 = vsub.f32 %v79, %v131
    %v134 = vsub.f32 %v82, %v131
    %v135 = vsub.f32 %v85, %v131
    %v136 = vsub.f32 %v88, %v131
    %v137 = vsub.f32 %v91, %v131
    %v138 = vsub.f32 %v94, %v131
    %v139 = vsub.f32 %v97, %v131
    %v140 = vmul.f32 %v132, 1.442695
    %v141 = vpow.pop %v140
    %v142 = vmul.f32 %v133, 1.442695
    %v143 = vpow.pop %v142
    %v144 = vmul.f32 %v134, 1.442695
    %v145 = vpow.pop %v144
    %v146 = vmul.f32 %v135, 1.442695
    %v147 = vpow.pop %v146
    %v148 = vmul.f32 %v136, 1.442695
    %v149 = vpow.pop %v148
    %v150 = vmul.f32 %v137, 1.442695
    %v151 = vpow.pop %v150
    %v152 = vmul.f32 %v138, 1.442695
    %v153 = vpow.pop %v152
    %v154 = vmul.f32 %v139, 1.442695
    %v155 = vpow.pop %v154
    %v156 = vsel %vm100, %v141, 0.0
    %v157 = vsel %vm101, %v143, 0.0
    %v158 = vsel %vm102, %v145, 0.0
    %v159 = vsel %vm103, %v147, 0.0
    %v160 = vsel %vm104, %v149, 0.0
    %v161 = vsel %vm105, %v151, 0.0
    %v162 = vsel %vm106, %v153, 0.0
    %v163 = vsel %vm107, %v155, 0.0
    %v164 = vsel %vm116, %v156, 0.0
    %v165 = vsel %vm116, %v157, 0.0
    %v166 = vadd.f32 %v164, %v165
    %v167 = vsel %vm116, %v158, 0.0
    %v168 = vadd.f32 %v166, %v167
    %v169 = vsel %vm116, %v159, 0.0
    %v170 = vadd.f32 %v168, %v169
    %v171 = vsel %vm116, %v160, 0.0
    %v172 = vadd.f32 %v170, %v171
    %v173 = vsel %vm116, %v161, 0.0
    %v174 = vadd.f32 %v172, %v173
    %v175 = vsel %vm116, %v162, 0.0
    %v176 = vadd.f32 %v174, %v175
    %v177 = vsel %vm116, %v163, 0.0
    %v178 = vadd.f32 %v176, %v177
    %180 = vset.pattern.permute.xlu0 0
    %181 = vperm.xlu0 %180, %v156
    %v182 = vpop.permute.xlu0 %181
    %185 = vset.pattern.permute.xlu0 0
    %186 = vperm.xlu0 %185, %v157
    %v187 = vpop.permute.xlu0 %186
    %190 = vset.pattern.permute.xlu0 0
    %191 = vperm.xlu0 %190, %v158
    %v192 = vpop.permute.xlu0 %191
    %195 = vset.pattern.permute.xlu0 0
    %196 = vperm.xlu0 %195, %v159
    %v197 = vpop.permute.xlu0 %196
    %200 = vset.pattern.permute.xlu0 0
    %201 = vperm.xlu0 %200, %v160
    %v202 = vpop.permute.xlu0 %201
    %205 = vset.pattern.permute.xlu0 0
    %206 = vperm.xlu0 %205, %v161
    %v207 = vpop.permute.xlu0 %206
    %210 = vset.pattern.permute.xlu0 0
    %211 = vperm.xlu0 %210, %v162
    %v212 = vpop.permute.xlu0 %211
    %215 = vset.pattern.permute.xlu0 0
    %216 = vperm.xlu0 %215, %v163
    %v217 = vpop.permute.xlu0 %216
    %v219 = vmul.f32 %v21, %v182
    %v220 = vmul.f32 %v22, %v187
    %v221 = vmul.f32 %v23, %v192
    %v222 = vmul.f32 %v24, %v197
    %v223 = vmul.f32 %v25, %v202
    %v224 = vmul.f32 %v26, %v207
    %v225 = vmul.f32 %v27, %v212
    %v226 = vmul.f32 %v28, %v217
    %v227 = vsel %vm33, %v219, 0.0
    %v228 = vsel %vm33, %v220, 0.0
    %v229 = vadd.f32 %v227, %v228
    %v230 = vsel %vm33, %v221, 0.0
    %v231 = vadd.f32 %v229, %v230
    %v232 = vsel %vm33, %v222, 0.0
    %v233 = vadd.f32 %v231, %v232
    %v234 = vsel %vm33, %v223, 0.0
    %v235 = vadd.f32 %v233, %v234
    %v236 = vsel %vm33, %v224, 0.0
    %v237 = vadd.f32 %v235, %v236
    %v238 = vsel %vm33, %v225, 0.0
    %v239 = vadd.f32 %v237, %v238
    %v240 = vsel %vm33, %v226, 0.0
    %v241 = vadd.f32 %v239, %v240
    %v242 = vld [vmem:[%s2] sm:$0xff]
    %v243 = vld [vmem:[%s2 + $0x8] sm:$0xff]
    %v244 = vld [vmem:[%s2 + $0x10] sm:$0xff]
    %v245 = vld [vmem:[%s2 + $0x18] sm:$0xff]
    %v247 = vsel %vm33, %v241, 0
    %249 = vmatpush.msra.mxu0 0.0
    %250 = vmatpush.msra.mxu0 0.0
    %251 = vmatpush.msra.mxu0 0.0
    %252 = vmatpush.msra.mxu0 0.0
    %253 = vmatpush.msra.mxu0 0.0
    %254 = vmatpush.msra.mxu0 0.0
    %255 = vmatpush.msra.mxu0 0.0
    %256 = vmatpush.msra.mxu0 0.0
    %257 = vmatpush.msra.mxu0 0.0
    %258 = vmatpush.msra.mxu0 0.0
    %259 = vmatpush.msra.mxu0 0.0
    %260 = vmatpush.msra.mxu0 0.0
    %261 = vmatpush.msra.mxu0 %v245
    %262 = vmatpush.msra.mxu0 %v244
    %263 = vmatpush.msra.mxu0 %v243
    %264 = vmatpush.msra.mxu0 %v242
    %265 = vmatmul.f32.gmra.mxu0 %v247
    %v266 = vpop.f32.mrf.mxu0
    %v267 = vadd.f32 0.0, %v266
    %268 = vdwg.mxu0
    %v269 = vrcp.pop %v178
    %v270 = vmul.f32 %v178, %v269
    %v271 = vsub.f32 1.0, %v270
    %v272 = vmul.f32 %v269, %v271
    %v273 = vadd.f32 %v269, %v272
    %vm274 = vweird.f32 %v178
    %vm275 = vweird.f32 %v269
    %vm276 = vmor %vm274, %vm275
    %v277 = vsel %vm276, %v269, %v273
    %v278 = vand.u32 2147483647, %v178
    %vm279 = vcmp.eq.f32.partialorder %v278, 8.507059e+37
    %v280 = vand.u32 %v178, 2147483648
    %v281 = vor.u32 1.1754944e-38, %v280
    %v282 = vsel %vm279, %v281, %v277
    %284 = vset.pattern.permute.xlu0 0
    %285 = vperm.xlu0 %284, %v282
    %v286 = vpop.permute.xlu0 %285
    %v288 = vmul.f32 %v267, %v286
    %v289 = vld [vmem:[%s3] sm:$0x1]
    %v291 = vperm.slane %v289, 0
    %v293 = vadd.f32 %v288, %v291
    %vm294 = vcmask 130048
    %295 = vst.msk [vmem:[#allocation2] sm:$0xff] %vm294, %v293
    // Predicated region
    $region22: #{tpu_custom_call.1} parent=1 // pred_check
      _
    $region23: #{tpu_custom_call.1} parent=1 // pred_check_branch
      %297 = sbr.rel (0) target = $region25
    $region24: #{tpu_custom_call.1} parent=1 // pred_region
      %299 = vsyncadd [#allocation3], 0
      %s301 = sshll.u32 [#allocation2], 4
      %s302 = int_to_ptr.vmem [resolvable:$true] %s301
      %s303 = sshll.u32 %s5, 4
      %s304 = int_to_ptr.hbm [resolvable:$true] %s303
      %306 = dma.vmem_to_hbm [thread:$0]  %s302, 128, %s304, [#allocation3]
    $region25: #{tpu_custom_call.1} parent=1 // pred_fallthru
      _
    // Predicated region
    $region26: #{tpu_custom_call.1} parent=1 // pred_check
      _
    $region27: #{tpu_custom_call.1} parent=1 // pred_check_branch
      %308 = sbr.rel (0) target = $region29
    $region28: #{tpu_custom_call.1} parent=1 // pred_region
      %310 = dma.done [#allocation3], 128
    $region29: #{tpu_custom_call.1} parent=1 // pred_fallthru
      _
    %311 = vsyncpa [#allocation3], 1

</llo_original>
